<compile_context>
chip_gen: v5e
topology: v5e:2x2
jax: 0.10.0
libtpu: 0.0.40
codegen_flags: <defaults>
</compile_context>

<pallas_src>
import functools

import jax
import jax.numpy as jnp
from jax import lax
from jax.experimental import pallas as pl
from jax.experimental.pallas import tpu as pltpu

LANES = 128
# Combined bytes (both inputs) streamed per grid step: ~2 MiB per input for
# f32+f32 sources (4096 rows); narrower dtypes get proportionally more rows so
# DMA time per step stays constant.
TARGET_STEP_BYTES = 4 * 1024 * 1024


def _dice_partials_kernel(x_ref, t_ref, o_ref, *, block_rows: int,
                          blocks_per_split: int, n_rows: int, n_blocks: int,
                          ragged: bool, clamp: bool):
    """Accumulates per-lane partials [sum(x*t) | sum(x+t)] into o_ref (1, 256)."""
    s = pl.program_id(0)              # split index ("parallel" axis)
    j = pl.program_id(1)              # block within split (reduction axis)
    g = s * blocks_per_split + j      # unclamped global block index

    @pl.when(j == 0)
    def _():
        o_ref[...] = jnp.zeros_like(o_ref)

    def accum(mask_rows: bool):
        # Cast in-kernel (VPU, hidden under DMA); inputs stream in their
        # original (possibly narrow) dtype.
        xf = x_ref[...].astype(jnp.float32)
        tf = t_ref[...].astype(jnp.float32)
        if mask_rows:
            rows = (lax.broadcasted_iota(jnp.int32, (block_rows, LANES), 0)
                    + g * block_rows)
            valid = rows < n_rows
            xf = jnp.where(valid, xf, 0.0)
            tf = jnp.where(valid, tf, 0.0)
        prod = jnp.sum(xf * tf, axis=0, keepdims=True)   # (1, 128)
        ssum = jnp.sum(xf + tf, axis=0, keepdims=True)   # (1, 128)
        # Single fused accumulator update (lane-concat: vreg-aligned, cheap).
        o_ref[...] += jnp.concatenate([prod, ssum], axis=1)

    if (not ragged) and (not clamp):
        # Every grid step maps to a distinct, fully-valid block.
        accum(False)
    else:
        last = n_blocks - 1
        interior = (g < last) if ragged else (g < n_blocks)

        @pl.when(interior)
        def _():
            accum(False)          # unmasked fast path for interior blocks

        if ragged:
            @pl.when(g == last)
            def _():
                accum(True)       # masked ragged last block
        # g >= n_blocks (clamped overhang steps) contribute nothing.


def dice_loss_smooth(inputs: jax.Array, targets: jax.Array, smooth: float = 1.0,
                     *, max_block_rows: int | None = None) -> jax.Array:
    """JAX/Pallas equivalent of DiceLossSmooth.forward (returns a scalar f32)."""
    x = inputs.reshape(-1)
    t = targets.reshape(-1)
    # Keep the HBM stream narrow: bools become 1-byte int8 (never widened to
    # f32 in the wrapper); all other dtypes stream as-is and cast in-kernel.
    if x.dtype == jnp.bool_:
        x = x.astype(jnp.int8)
    if t.dtype == jnp.bool_:
        t = t.astype(jnp.int8)

    n = x.shape[0]
    n_rows = n // LANES
    n_main = n_rows * LANES

    # <=127-element ragged tail: reduced with plain jnp outside the kernel
    # (no full-array jnp.pad pass over HBM).
    x_tail = x[n_main:].astype(jnp.float32)
    t_tail = t[n_main:].astype(jnp.float32)
    inter = jnp.sum(x_tail * t_tail)
    sum_xt = jnp.sum(x_tail) + jnp.sum(t_tail)

    if n_rows > 0:
        x2 = x[:n_main].reshape(n_rows, LANES)
        t2 = t[:n_main].reshape(n_rows, LANES)

        # Dtype-aware tile sizing: ~TARGET_STEP_BYTES of combined input bytes
        # per grid step; rows a multiple of 32 for narrow-dtype sublane packing.
        step_row_bytes = LANES * (x2.dtype.itemsize + t2.dtype.itemsize)
        rows_budget = max(32, (TARGET_STEP_BYTES // step_row_bytes) // 32 * 32)
        if max_block_rows is not None:
            rows_budget = min(rows_budget, max_block_rows)
        block_rows = n_rows if n_rows <= rows_budget else rows_budget
        n_blocks = -(-n_rows // block_rows)

        # Leading "parallel" axis: intended per-TensorCore split on v7x;
        # sequential (and nearly free) on single-TC v5e/v6e.
        # TODO(synk): gate num_splits on a 2-TC part (pltpu.get_tpu_info) and use
        # CORE_PARALLEL there; the plain "parallel" tag may not shard across TCs.
        num_splits = 2 if n_blocks >= 4 else 1
        blocks_per_split = -(-n_blocks // num_splits)

        ragged = (n_blocks * block_rows) != n_rows
        clamp = (num_splits * blocks_per_split) != n_blocks

        def in_index_map(s, j):
            g = s * blocks_per_split + j
            if clamp:
                # Overhanging grid steps re-read the last real block; the
                # kernel skips their accumulation under pl.when.
                g = jnp.minimum(g, n_blocks - 1)
            return (g, 0)

        kernel = functools.partial(
            _dice_partials_kernel,
            block_rows=block_rows,
            blocks_per_split=blocks_per_split,
            n_rows=n_rows,
            n_blocks=n_blocks,
            ragged=ragged,
            clamp=clamp,
        )

        bytes_accessed = (n_main * (x2.dtype.itemsize + t2.dtype.itemsize)
                          + num_splits * 2 * LANES * 4)
        partials = pl.pallas_call(
            kernel,
            out_shape=jax.ShapeDtypeStruct((num_splits, 1, 2 * LANES),
                                           jnp.float32),
            grid_spec=pltpu.PrefetchScalarGridSpec(
                num_scalar_prefetch=0,
                grid=(num_splits, blocks_per_split),
                in_specs=[
                    pl.BlockSpec((block_rows, LANES), in_index_map),
                    pl.BlockSpec((block_rows, LANES), in_index_map),
                ],
                # Per-split (1, 256) partial slab, resident across the j axis.
                out_specs=pl.BlockSpec((None, 1, 2 * LANES),
                                       lambda s, j: (s, 0, 0)),
            ),
            compiler_params=pltpu.CompilerParams(
                dimension_semantics=("parallel", "arbitrary"),
                vmem_limit_bytes=32 * 1024 * 1024,
            ),
            cost_estimate=pl.CostEstimate(
                flops=4 * n_main,
                transcendentals=0,
                bytes_accessed=bytes_accessed,
            ),
        )(x2, t2)

        # Tiny final combine (cross-lane + cross-split) outside the kernel.
        psum = jnp.sum(partials, axis=(0, 1))          # (256,)
        inter = inter + jnp.sum(psum[:LANES])           # sum(x * t)
        sum_xt = sum_xt + jnp.sum(psum[LANES:])         # sum(x) + sum(t)

    dice = (2.0 * inter + smooth) / (sum_xt + smooth)
    return (1.0 - dice).astype(jnp.float32)


def _reference(inputs, targets, smooth=1.0):
    xi = inputs.reshape(-1).astype(jnp.float32)
    ti = targets.reshape(-1).astype(jnp.float32)
    inter = jnp.sum(xi * ti)
    return 1.0 - (2.0 * inter + smooth) / (jnp.sum(xi) + jnp.sum(ti) + smooth)


if __name__ == "__main__":
    key = jax.random.PRNGKey(0)
    k1, k2, k3, k4, k5, k6 = jax.random.split(key, 6)

    # 1) Primary check: segmentation-style NCHW; single-full-block fast path.
    inputs = jax.nn.sigmoid(jax.random.normal(k1, (2, 4, 16, 16), dtype=jnp.float32))
    targets = (jax.random.uniform(k2, (2, 4, 16, 16)) > 0.5).astype(jnp.float32)
    loss = dice_loss_smooth(inputs, targets, smooth=1.0)
    jax.block_until_ready(loss)
    ref = _reference(inputs, targets, smooth=1.0)
    assert jnp.allclose(loss, ref, atol=1e-5, rtol=1e-4), (loss, ref)

    # 2) Multi-block / 2-split / clamped-overhang / ragged-row-block /
    #    element-tail paths, exercised cheaply via a small block override.
    inputs2 = jax.nn.sigmoid(jax.random.normal(k3, (2, 5, 10, 127), dtype=jnp.float32))
    targets2 = (jax.random.uniform(k4, (2, 5, 10, 127)) > 0.5).astype(jnp.float32)
    loss2 = dice_loss_smooth(inputs2, targets2, smooth=1.0, max_block_rows=8)
    jax.block_until_ready(loss2)
    ref2 = _reference(inputs2, targets2, smooth=1.0)
    assert jnp.allclose(loss2, ref2, atol=1e-5, rtol=1e-4), (loss2, ref2)

    # 3) Narrow-dtype streaming: bf16 inputs + boolean mask targets
    #    (streamed as bf16 / int8, cast to f32 in-kernel).
    inputs3 = jax.nn.sigmoid(jax.random.normal(k5, (4, 8, 16, 16))).astype(jnp.bfloat16)
    targets3 = jax.random.uniform(k6, (4, 8, 16, 16)) > 0.5
    loss3 = dice_loss_smooth(inputs3, targets3, smooth=1.0)
    jax.block_until_ready(loss3)
    ref3 = _reference(inputs3, targets3, smooth=1.0)
    assert jnp.allclose(loss3, ref3, atol=1e-5, rtol=1e-4), (loss3, ref3)

    print("KERNEL_OK")
</pallas_src>

<mosaic_0001>
module attributes {stable_mosaic.version = 11 : i64} {
  func.func @_dice_partials_kernel(%arg0: i32, %arg1: i32, %arg2: memref<16x128xf32, #tpu.memory_space<vmem>>, %arg3: memref<16x128xf32, #tpu.memory_space<vmem>>, %arg4: memref<1x1x256xf32, #tpu.memory_space<vmem>>) attributes {dimension_semantics = [#tpu.dimension_semantics<parallel>, #tpu.dimension_semantics<arbitrary>], iteration_bounds = array<i64: 1, 1>, scalar_prefetch = 0 : i64, scratch_operands = 0 : i64, tpu.core_type = #tpu.core_type<tc>, window_params = [{transform_indices = @transform_0, window_bounds = array<i64: 16, 128>}, {transform_indices = @transform_1, window_bounds = array<i64: 16, 128>}, {transform_indices = @transform_2, window_bounds = array<i64: 1, 1, 256>}]} {
    %c0_i32 = arith.constant 0 : i32
    %0 = arith.cmpi eq, %arg1, %c0_i32 : i32
    %1 = arith.extui %0 : i1 to i32
    %c0_i32_0 = arith.constant 0 : i32
    %2 = arith.cmpi ne, %1, %c0_i32_0 : i32
    scf.if %2 {
      %cst_11 = arith.constant 0.000000e+00 : f32
      %18 = vector.broadcast %cst_11 : f32 to vector<1x256xf32>
      %c0_12 = arith.constant 0 : index
      %c0_13 = arith.constant 0 : index
      %c0_14 = arith.constant 0 : index
      %19 = vector.load %arg4[%c0_12, %c0_13, %c0_14] : memref<1x1x256xf32, #tpu.memory_space<vmem>>, vector<1x1x256xf32>
      %20 = vector.shape_cast %19 : vector<1x1x256xf32> to vector<1x256xf32>
      %21 = vector.shape_cast %18 : vector<1x256xf32> to vector<1x1x256xf32>
      tpu.vector_store %arg4[%c0_12, %c0_13, %c0_14], %21 {strides = array<i32>} : memref<1x1x256xf32, #tpu.memory_space<vmem>>, vector<1x1x256xf32>,
    } else {
    }
    %c0 = arith.constant 0 : index
    %c0_1 = arith.constant 0 : index
    %3 = vector.load %arg2[%c0, %c0_1] : memref<16x128xf32, #tpu.memory_space<vmem>>, vector<16x128xf32>
    %c0_2 = arith.constant 0 : index
    %c0_3 = arith.constant 0 : index
    %4 = vector.load %arg3[%c0_2, %c0_3] : memref<16x128xf32, #tpu.memory_space<vmem>>, vector<16x128xf32>
    %5 = arith.mulf %3, %4 : vector<16x128xf32>
    %cst = arith.constant dense<0.000000e+00> : vector<128xf32>
    %6 = vector.multi_reduction <add>, %5, %cst [0] : vector<16x128xf32> to vector<128xf32>
    %7 = vector.shape_cast %6 : vector<128xf32> to vector<1x128xf32>
    %8 = arith.addf %3, %4 : vector<16x128xf32>
    %cst_4 = arith.constant dense<0.000000e+00> : vector<128xf32>
    %9 = vector.multi_reduction <add>, %8, %cst_4 [0] : vector<16x128xf32> to vector<128xf32>
    %10 = vector.shape_cast %9 : vector<128xf32> to vector<1x128xf32>
    %c0_5 = arith.constant 0 : index
    %c0_6 = arith.constant 0 : index
    %c0_7 = arith.constant 0 : index
    %11 = vector.load %arg4[%c0_5, %c0_6, %c0_7] : memref<1x1x256xf32, #tpu.memory_space<vmem>>, vector<1x1x256xf32>
    %12 = vector.shape_cast %11 : vector<1x1x256xf32> to vector<1x256xf32>
    %13 = tpu.concatenate %7, %10 in 1 : vector<1x128xf32>, vector<1x128xf32> -> vector<1x256xf32>
    %14 = arith.addf %12, %13 : vector<1x256xf32>
    %c0_8 = arith.constant 0 : index
    %c0_9 = arith.constant 0 : index
    %c0_10 = arith.constant 0 : index
    %15 = vector.load %arg4[%c0_8, %c0_9, %c0_10] : memref<1x1x256xf32, #tpu.memory_space<vmem>>, vector<1x1x256xf32>
    %16 = vector.shape_cast %15 : vector<1x1x256xf32> to vector<1x256xf32>
    %17 = vector.shape_cast %14 : vector<1x256xf32> to vector<1x1x256xf32>
    tpu.vector_store %arg4[%c0_8, %c0_9, %c0_10], %17 {strides = array<i32>} : memref<1x1x256xf32, #tpu.memory_space<vmem>>, vector<1x1x256xf32>,
    return
  }
  func.func @transform_0(%arg0: i32, %arg1: i32) -> (i32, i32) {
    %c1_i32 = arith.constant 1 : i32
    %0 = arith.muli %arg0, %c1_i32 : i32
    %1 = arith.addi %0, %arg1 : i32
    %c0_i32 = arith.constant 0 : i32
    %c0_i32_0 = arith.constant 0 : i32
    return %1, %c0_i32 : i32, i32
  }
  func.func @transform_1(%arg0: i32, %arg1: i32) -> (i32, i32) {
    %c1_i32 = arith.constant 1 : i32
    %0 = arith.muli %arg0, %c1_i32 : i32
    %1 = arith.addi %0, %arg1 : i32
    %c0_i32 = arith.constant 0 : i32
    %c0_i32_0 = arith.constant 0 : i32
    return %1, %c0_i32 : i32, i32
  }
  func.func @transform_2(%arg0: i32, %arg1: i32) -> (i32, i32, i32) {
    %c0_i32 = arith.constant 0 : i32
    %c0_i32_0 = arith.constant 0 : i32
    %c0_i32_1 = arith.constant 0 : i32
    return %arg0, %c0_i32, %c0_i32_0 : i32, i32, i32
  }
}

</mosaic_0001>

<llo_original>
// kernel: tpu_custom_call.1
$region0: #{tpu_custom_call.1}
  #allocation0 [shape = 'u32[]', space=smem, size = 0x4, offset = 0x4, fixed_abs, tag = 'smem constant byte address 0x4 - core index']
  #allocation1 [shape = 'u32[72,128]{1,0:T(1,128)}', space=vmem, size = 0x9000, scoped, tag = 'internal scratch']
  %s0 = inlined_call_operand.hbm [shape: f32[16,128], index: 0, kind: input, shape index: {}]
  %s1 = inlined_call_operand.hbm [shape: f32[16,128], index: 1, kind: input, shape index: {}]
  %s2 = inlined_call_operand.hbm [shape: f32[1,1,256], index: 2, kind: output, shape index: {}]
  %s3 = sld [smem:[#allocation0]]
  $region30: #{tpu_custom_call.1} parent=0
    _
  %s5 = ssub.s32 1, %s3
  %s6 = scalar_select 0, %s5, %s3
  $region1: #{tpu_custom_call.1} parent=0
    #allocation2 [shape = 'u8[8192]{0}', space=vmem, size = 0x2000, scoped, tag = 'input window, operand 0, single buffered']
    #allocation3 [shape = 's32[1]{0}', space=sflag, size = 0x4, scoped, tag = 'scoped memory for tpu_custom_call.1']
    #allocation4 [shape = 's32[1]{0}', space=sflag, size = 0x4, scoped, tag = 'scoped memory for tpu_custom_call.1']
    #allocation5 [shape = 'u8[8192]{0}', space=vmem, size = 0x2000, scoped, tag = 'input window, operand 1, single buffered']
    #allocation6 [shape = 's32[1]{0}', space=sflag, size = 0x4, scoped, tag = 'scoped memory for tpu_custom_call.1']
    #allocation7 [shape = 'u8[1024]{0}', space=vmem, size = 0x400, scoped, tag = 'output window, operand 0, single buffered']
    %7 = vsyncpa [#allocation3], 0
    %8 = vsyncpa [#allocation6], 0
    %9 = vsyncpa [#allocation4], 0
    // Predicated region
    $region2: #{tpu_custom_call.1} parent=1 // pred_check
      _
    $region3: #{tpu_custom_call.1} parent=1 // pred_check_branch
      %11 = sbr.rel (0) target = $region5
    $region4: #{tpu_custom_call.1} parent=1 // pred_region
      %s12 = sadd.s32 0, 0
      %s13 = smul.u32 2, %s12
      %15 = vsyncadd [#allocation3], 0
      %s16 = smul.addr %s13, 8
      %s17 = scalar_lea.hbm %s0, %s16
      %s18 = sshll.u32 %s17, 4
      %s19 = int_to_ptr.hbm [resolvable:$true] %s18
      %s20 = sshll.u32 [#allocation2], 4
      %s21 = int_to_ptr.vmem [resolvable:$true] %s20
      %26 = dma.hbm_to_vmem [thread:$0]  %s19, 256, %s21, [#allocation3], 128, 128, 8
    $region5: #{tpu_custom_call.1} parent=1 // pred_fallthru
      _
    // Predicated region
    $region6: #{tpu_custom_call.1} parent=1 // pred_check
      _
    $region7: #{tpu_custom_call.1} parent=1 // pred_check_branch
      %28 = sbr.rel (0) target = $region9
    $region8: #{tpu_custom_call.1} parent=1 // pred_region
      %s29 = sadd.s32 0, 0
      %s30 = smul.u32 2, %s29
      %32 = vsyncadd [#allocation6], 0
      %s33 = smul.addr %s30, 8
      %s34 = scalar_lea.hbm %s1, %s33
      %s35 = sshll.u32 %s34, 4
      %s36 = int_to_ptr.hbm [resolvable:$true] %s35
      %s37 = sshll.u32 [#allocation5], 4
      %s38 = int_to_ptr.vmem [resolvable:$true] %s37
      %43 = dma.hbm_to_vmem [thread:$0]  %s36, 256, %s38, [#allocation6], 128, 128, 8
    $region9: #{tpu_custom_call.1} parent=1 // pred_fallthru
      _
    // Predicated region
    $region10: #{tpu_custom_call.1} parent=1 // pred_check
      _
    $region11: #{tpu_custom_call.1} parent=1 // pred_check_branch
      %45 = sbr.rel (0) target = $region13
    $region12: #{tpu_custom_call.1} parent=1 // pred_region
      %47 = dma.done [#allocation3], 256
    $region13: #{tpu_custom_call.1} parent=1 // pred_fallthru
      _
    // Predicated region
    $region14: #{tpu_custom_call.1} parent=1 // pred_check
      _
    $region15: #{tpu_custom_call.1} parent=1 // pred_check_branch
      %49 = sbr.rel (0) target = $region17
    $region16: #{tpu_custom_call.1} parent=1 // pred_region
      %51 = dma.done [#allocation6], 256
    $region17: #{tpu_custom_call.1} parent=1 // pred_fallthru
      _
    %s52 = sadd.s32 0, 0
    %s53 = smul.u32 2, %s52
    %s54 = sadd.s32 0, 0
    %s55 = smul.u32 2, %s54
    %p56 = scmp.eq.s32.totalorder 0, 0
    // Predicated region
    $region18: #{tpu_custom_call.1} parent=1 // pred_check
      %p57 = pneg %p56
    $region19: #{tpu_custom_call.1} parent=1 // pred_check_branch
      %59 = sbr.rel (%p57) target = $region21
    $region20: #{tpu_custom_call.1} parent=1 // pred_region
      %v60 = vlaneseq
      %vm61 = vcmp.ge.s32.totalorder %v60, 0
      %vm62 = vcmp.lt.s32.totalorder %v60, 256
      %vm63 = vmand %vm61, %vm62
      %64 = vst.msk [vmem:[#allocation7] sm:$0x3] %vm63, 0.0
    $region21: #{tpu_custom_call.1} parent=1 // pred_fallthru
      _
    %v65 = vld [vmem:[#allocation2] sm:$0xff]
    %v66 = vld [vmem:[#allocation2 + $0x8] sm:$0xff]
    %v67 = vld [vmem:[#allocation5] sm:$0xff]
    %v68 = vld [vmem:[#allocation5 + $0x8] sm:$0xff]
    %v69 = vmul.f32 %v65, %v67
    %v70 = vmul.f32 %v66, %v68
    %v71 = vadd.f32 %v69, %v70
    %v72 = vrot.slane %v71, 4
    %v73 = vadd.f32 %v71, %v72
    %v74 = vrot.slane %v73, 2
    %v75 = vadd.f32 %v73, %v74
    %v76 = vrot.slane %v75, 1
    %v77 = vadd.f32 %v75, %v76
    %v78 = vadd.f32 %v65, %v67
    %v79 = vadd.f32 %v66, %v68
    %v80 = vadd.f32 %v78, %v79
    %v81 = vrot.slane %v80, 4
    %v82 = vadd.f32 %v80, %v81
    %v83 = vrot.slane %v82, 2
    %v84 = vadd.f32 %v82, %v83
    %v85 = vrot.slane %v84, 1
    %v86 = vadd.f32 %v84, %v85
    %v87 = vld [vmem:[#allocation7] sm:$0x3]
    %v90 = vrot.slane %v86, 7
    %vm91 = vcmask 1040384
    %v92 = vsel %vm91, %v77, %v90
    %v94 = vadd.f32 %v87, %v92
    %v95 = vlaneseq
    %vm96 = vcmp.ge.s32.totalorder %v95, 0
    %vm97 = vcmp.lt.s32.totalorder %v95, 256
    %vm98 = vmand %vm96, %vm97
    %99 = vst.msk [vmem:[#allocation7] sm:$0x3] %vm98, %v94
    // Predicated region
    $region22: #{tpu_custom_call.1} parent=1 // pred_check
      _
    $region23: #{tpu_custom_call.1} parent=1 // pred_check_branch
      %101 = sbr.rel (0) target = $region25
    $region24: #{tpu_custom_call.1} parent=1 // pred_region
      %103 = vsyncadd [#allocation4], 0
      %s105 = sshll.u32 [#allocation7], 4
      %s106 = int_to_ptr.vmem [resolvable:$true] %s105
      %s107 = sshll.u32 %s2, 4
      %s108 = int_to_ptr.hbm [resolvable:$true] %s107
      %110 = dma.vmem_to_hbm [thread:$0]  %s106, 32, %s108, [#allocation4]
    $region25: #{tpu_custom_call.1} parent=1 // pred_fallthru
      _
    // Predicated region
    $region26: #{tpu_custom_call.1} parent=1 // pred_check
      _
    $region27: #{tpu_custom_call.1} parent=1 // pred_check_branch
      %112 = sbr.rel (0) target = $region29
    $region28: #{tpu_custom_call.1} parent=1 // pred_region
      %114 = dma.done [#allocation4], 32
    $region29: #{tpu_custom_call.1} parent=1 // pred_fallthru
      _
    %115 = vsyncpa [#allocation3], 1
    %116 = vsyncpa [#allocation6], 1
    %117 = vsyncpa [#allocation4], 1

</llo_original>
